<compile_context>
chip_gen: v7x
topology: tpu7x:2x2x1
jax: 0.10.0
libtpu: 0.0.40
codegen_flags: <defaults>
</compile_context>

<pallas_src>
import functools

import jax
import jax.numpy as jnp
from jax import lax
from jax.experimental import pallas as pl
from jax.experimental.pallas import tpu as pltpu

_LANES = 128
_SUBLANES = 8


def _smooth_loss_kernel(labels_ref, preds_ref, out_ref, *, tm, m_rows, n_inner,
                        needs_mask):
    c = pl.program_id(0)   # core-split axis (CORE_PARALLEL on v7x, size 1 else)
    i = pl.program_id(1)   # reduction axis ("arbitrary")

    # Zero this core's partial-sum block at the start of its reduction loop.
    @pl.when(i == 0)
    def _():
        out_ref[...] = jnp.zeros_like(out_ref)

    lab = labels_ref[...].astype(jnp.float32)
    pred = preds_ref[...].astype(jnp.float32)
    diff = jnp.abs(lab - pred)
    # Matches the PyTorch module: le(diff, 1) branch -> 0.5*diff^2, else diff-0.5.
    smooth = jnp.where(diff <= 1.0, 0.5 * diff * diff, diff - 0.5)

    def _fold(x):
        # (tm, 128) -> (8, 128) vreg-shaped partial sum; VALU-only sublane fold.
        return x.reshape(tm // _SUBLANES, _SUBLANES, _LANES).sum(axis=0)[None]

    if needs_mask:
        row0 = (c * n_inner + i) * tm

        # Interior (full) blocks: keep the mask off the hot path.
        @pl.when(row0 + tm <= m_rows)
        def _():
            out_ref[...] += _fold(smooth)

        # Partial / fully out-of-range blocks (incl. duplicates coming from
        # the clamped index_map): zero all rows at/after m_rows.
        # NOTE: correctness relies on jnp.where being a *select* -- OOB rows
        # may contain garbage (NaN/Inf) that must never be combined
        # multiplicatively with the kept values.
        @pl.when(row0 + tm > m_rows)
        def _():
            row = lax.broadcasted_iota(jnp.int32, smooth.shape, 0)
            out_ref[...] += _fold(jnp.where(row0 + row < m_rows, smooth, 0.0))
    else:
        out_ref[...] += _fold(smooth)


def _default_core_split():
    """2 on two-TensorCore chips (v7x-class); 1 on single-TC v5e/v6e."""
    try:
        kind = jax.devices()[0].device_kind.lower()
    except Exception:
        return 1
    return 2 if "v7" in kind else 1


def smooth_loss(labels, predictions, *, tm=4096, core_split=None):
    """Mean smooth-L1 loss over all elements (matches Smooth_Loss.forward)."""
    assert labels.shape == predictions.shape
    n = labels.size

    lab = labels.reshape(-1)
    pred = predictions.reshape(-1)

    # Native sublane granularity of the narrower input dtype:
    # 8 rows for 32-bit, 16 for 16-bit, 32 for 8-bit.
    itemsize = min(jnp.dtype(labels.dtype).itemsize,
                   jnp.dtype(predictions.dtype).itemsize)
    sub = _SUBLANES * max(1, 4 // itemsize)
    min_elems = sub * _LANES

    # Lane alignment: view as (m, 128).  Contiguous reshape = bitcast, no copy.
    if n % _LANES != 0 or n < min_elems:
        # TODO(synk): this pad is still a full HBM copy; for very large inputs
        # that are not 128-aligned, compute the <128-element tail in plain JAX
        # instead of padding.  Zero padding contributes exactly 0 to the sum.
        n_pad = max(-(-n // _LANES) * _LANES, min_elems)
        lab = jnp.pad(lab, (0, n_pad - n))
        pred = jnp.pad(pred, (0, n_pad - n))
    else:
        n_pad = n

    m = n_pad // _LANES
    # Largest row tile that is a multiple of the sublane granularity and <= m.
    tm_req = min(tm, m)
    tm_eff = max(sub, tm_req - (tm_req % sub))
    n_blocks = -(-m // tm_eff)

    split = core_split if core_split is not None else _default_core_split()
    split = split if (split > 1 and n_blocks >= split) else 1

    if split > 1 and hasattr(pltpu, "CORE_PARALLEL"):
        # Only CORE_PARALLEL actually shards a grid axis across TensorCores.
        dim_sems = (pltpu.CORE_PARALLEL, pltpu.ARBITRARY)
    elif split > 1:
        dim_sems = ("parallel", "arbitrary")
    else:
        dim_sems = ("arbitrary", "arbitrary")

    # VMEM budget: 2 inputs x 2 pipeline buffers x one (tm_eff, 128) block.
    block_bytes = tm_eff * _LANES * (jnp.dtype(labels.dtype).itemsize
                                     + jnp.dtype(predictions.dtype).itemsize)
    vmem_need = 2 * block_bytes + (2 << 20)
    # Only raise the scoped-VMEM limit when the v5e default (16 MiB) is too
    # small; cap well below v7x's 64 MiB physical VMEM.
    vmem_limit = None
    if vmem_need > (16 << 20):
        vmem_limit = int(min(vmem_need + (4 << 20), 48 << 20))

    def _launch(split, dim_sems):
        n_inner = -(-n_blocks // split)
        needs_mask = (m % tm_eff != 0) or (n_blocks % split != 0)

        kernel = functools.partial(
            _smooth_loss_kernel,
            tm=tm_eff, m_rows=m, n_inner=n_inner, needs_mask=needs_mask)

        # Clamp the block index so no DMA starts fully past the end of the
        # array; the in-kernel row mask zeroes duplicated / OOB contributions.
        def row_map(c, i):
            return (jnp.minimum(c * n_inner + i, n_blocks - 1), 0)

        return pl.pallas_call(
            kernel,
            out_shape=jax.ShapeDtypeStruct((split, _SUBLANES, _LANES),
                                           jnp.float32),
            grid_spec=pltpu.PrefetchScalarGridSpec(
                num_scalar_prefetch=0,
                grid=(split, n_inner),
                in_specs=[
                    pl.BlockSpec((tm_eff, _LANES), row_map),
                    pl.BlockSpec((tm_eff, _LANES), row_map),
                ],
                out_specs=pl.BlockSpec((1, _SUBLANES, _LANES),
                                       lambda c, i: (c, 0, 0)),
            ),
            compiler_params=pltpu.CompilerParams(
                dimension_semantics=dim_sems,
                vmem_limit_bytes=vmem_limit,
            ),
        )(lab.reshape(m, _LANES), pred.reshape(m, _LANES))

    try:
        partial_sums = _launch(split, dim_sems)
    except Exception:
        if split == 1:
            raise
        # Graceful fallback if the core-parallel variant is rejected by the
        # local toolchain/chip: run the single-core sequential version.
        partial_sums = _launch(1, ("arbitrary", "arbitrary"))

    # Tiny final reduction + mean over the ORIGINAL element count.
    return jnp.sum(partial_sums) / jnp.float32(n)


def smooth_loss_ref(labels, predictions):
    diff = jnp.abs(labels.astype(jnp.float32) - predictions.astype(jnp.float32))
    lt1 = (diff <= 1.0).astype(jnp.float32)
    smooth = lt1 * 0.5 * diff ** 2 + (1.0 - lt1) * (diff - 0.5)
    return jnp.mean(smooth)


if __name__ == "__main__":
    key = jax.random.PRNGKey(0)
    k1, k2, k3, k4 = jax.random.split(key, 4)

    # NCHW inputs, consistent with the PyTorch module's typical usage.
    labels = jax.random.normal(k1, (2, 4, 16, 16), dtype=jnp.float32) * 2.0
    predictions = jax.random.normal(k2, (2, 4, 16, 16), dtype=jnp.float32) * 2.0

    loss = smooth_loss(labels, predictions)
    jax.block_until_ready(loss)
    ref = smooth_loss_ref(labels, predictions)
    assert jnp.allclose(loss, ref, rtol=1e-5, atol=1e-6), (loss, ref)

    # Lane-aligned but not block-aligned (m=12 rows): exercises the gated
    # partial-block row mask with no host-side pad.
    lab_r = jax.random.normal(k3, (2, 3, 16, 16), dtype=jnp.float32) * 2.0
    pred_r = jax.random.normal(k4, (2, 3, 16, 16), dtype=jnp.float32) * 2.0
    loss_r = smooth_loss(lab_r, pred_r)
    jax.block_until_ready(loss_r)
    ref_r = smooth_loss_ref(lab_r, pred_r)
    assert jnp.allclose(loss_r, ref_r, rtol=1e-5, atol=1e-6), (loss_r, ref_r)

    # bf16 inputs: half the HBM bytes moved; accumulation stays f32 in-kernel.
    loss_bf = smooth_loss(labels.astype(jnp.bfloat16),
                          predictions.astype(jnp.bfloat16))
    jax.block_until_ready(loss_bf)
    ref_bf = smooth_loss_ref(labels.astype(jnp.bfloat16),
                             predictions.astype(jnp.bfloat16))
    assert jnp.allclose(loss_bf, ref_bf, rtol=5e-3, atol=5e-3), (loss_bf, ref_bf)

    print("KERNEL_OK")
</pallas_src>

<mosaic_0001>
module attributes {stable_mosaic.version = 11 : i64} {
  func.func @_smooth_loss_kernel(%arg0: i32, %arg1: i32, %arg2: memref<16x128xf32, #tpu.memory_space<vmem>>, %arg3: memref<16x128xf32, #tpu.memory_space<vmem>>, %arg4: memref<1x8x128xf32, #tpu.memory_space<vmem>>) attributes {dimension_semantics = [#tpu.dimension_semantics<arbitrary>, #tpu.dimension_semantics<arbitrary>], iteration_bounds = array<i64: 1, 1>, scalar_prefetch = 0 : i64, scratch_operands = 0 : i64, tpu.core_type = #tpu.core_type<tc>, window_params = [{transform_indices = @transform_0, window_bounds = array<i64: 16, 128>}, {transform_indices = @transform_1, window_bounds = array<i64: 16, 128>}, {transform_indices = @transform_2, window_bounds = array<i64: 1, 8, 128>}]} {
    %c0_i32 = arith.constant 0 : i32
    %0 = arith.cmpi eq, %arg1, %c0_i32 : i32
    %1 = arith.extui %0 : i1 to i32
    %c0_i32_0 = arith.constant 0 : i32
    %2 = arith.cmpi ne, %1, %c0_i32_0 : i32
    scf.if %2 {
      %cst_13 = arith.constant 0.000000e+00 : f32
      %21 = vector.broadcast %cst_13 : f32 to vector<1x8x128xf32>
      %c0_14 = arith.constant 0 : index
      %c0_15 = arith.constant 0 : index
      %c0_16 = arith.constant 0 : index
      %22 = vector.load %arg4[%c0_14, %c0_15, %c0_16] : memref<1x8x128xf32, #tpu.memory_space<vmem>>, vector<1x8x128xf32>
      tpu.vector_store %arg4[%c0_14, %c0_15, %c0_16], %21 {strides = array<i32>} : memref<1x8x128xf32, #tpu.memory_space<vmem>>, vector<1x8x128xf32>,
    } else {
    }
    %c0 = arith.constant 0 : index
    %c0_1 = arith.constant 0 : index
    %3 = vector.load %arg2[%c0, %c0_1] : memref<16x128xf32, #tpu.memory_space<vmem>>, vector<16x128xf32>
    %c0_2 = arith.constant 0 : index
    %c0_3 = arith.constant 0 : index
    %4 = vector.load %arg3[%c0_2, %c0_3] : memref<16x128xf32, #tpu.memory_space<vmem>>, vector<16x128xf32>
    %5 = arith.subf %3, %4 : vector<16x128xf32>
    %6 = math.absf %5 : vector<16x128xf32>
    %cst = arith.constant 1.000000e+00 : f32
    %7 = vector.broadcast %cst : f32 to vector<16x128xf32>
    %8 = arith.cmpf ole, %6, %7 : vector<16x128xf32>
    %cst_4 = arith.constant 5.000000e-01 : f32
    %9 = vector.broadcast %cst_4 : f32 to vector<16x128xf32>
    %10 = arith.mulf %9, %6 : vector<16x128xf32>
    %11 = arith.mulf %10, %6 : vector<16x128xf32>
    %cst_5 = arith.constant 5.000000e-01 : f32
    %12 = vector.broadcast %cst_5 : f32 to vector<16x128xf32>
    %13 = arith.subf %6, %12 : vector<16x128xf32>
    %14 = arith.select %8, %11, %13 : vector<16x128xi1>, vector<16x128xf32>
    %c0_6 = arith.constant 0 : index
    %c0_7 = arith.constant 0 : index
    %c0_8 = arith.constant 0 : index
    %15 = vector.load %arg4[%c0_6, %c0_7, %c0_8] : memref<1x8x128xf32, #tpu.memory_space<vmem>>, vector<1x8x128xf32>
    %16 = vector.shape_cast %14 : vector<16x128xf32> to vector<2x8x128xf32>
    %cst_9 = arith.constant dense<0.000000e+00> : vector<8x128xf32>
    %17 = vector.multi_reduction <add>, %16, %cst_9 [0] : vector<2x8x128xf32> to vector<8x128xf32>
    %18 = vector.shape_cast %17 : vector<8x128xf32> to vector<1x8x128xf32>
    %19 = arith.addf %15, %18 : vector<1x8x128xf32>
    %c0_10 = arith.constant 0 : index
    %c0_11 = arith.constant 0 : index
    %c0_12 = arith.constant 0 : index
    %20 = vector.load %arg4[%c0_10, %c0_11, %c0_12] : memref<1x8x128xf32, #tpu.memory_space<vmem>>, vector<1x8x128xf32>
    tpu.vector_store %arg4[%c0_10, %c0_11, %c0_12], %19 {strides = array<i32>} : memref<1x8x128xf32, #tpu.memory_space<vmem>>, vector<1x8x128xf32>,
    return
  }
  func.func @transform_0(%arg0: i32, %arg1: i32) -> (i32, i32) {
    %c1_i32 = arith.constant 1 : i32
    %0 = arith.muli %arg0, %c1_i32 : i32
    %1 = arith.addi %0, %arg1 : i32
    %c0_i32 = arith.constant 0 : i32
    %2 = arith.minsi %1, %c0_i32 : i32
    %c0_i32_0 = arith.constant 0 : i32
    %c0_i32_1 = arith.constant 0 : i32
    return %2, %c0_i32_0 : i32, i32
  }
  func.func @transform_1(%arg0: i32, %arg1: i32) -> (i32, i32) {
    %c1_i32 = arith.constant 1 : i32
    %0 = arith.muli %arg0, %c1_i32 : i32
    %1 = arith.addi %0, %arg1 : i32
    %c0_i32 = arith.constant 0 : i32
    %2 = arith.minsi %1, %c0_i32 : i32
    %c0_i32_0 = arith.constant 0 : i32
    %c0_i32_1 = arith.constant 0 : i32
    return %2, %c0_i32_0 : i32, i32
  }
  func.func @transform_2(%arg0: i32, %arg1: i32) -> (i32, i32, i32) {
    %c0_i32 = arith.constant 0 : i32
    %c0_i32_0 = arith.constant 0 : i32
    %c0_i32_1 = arith.constant 0 : i32
    return %arg0, %c0_i32, %c0_i32_0 : i32, i32, i32
  }
}

</mosaic_0001>

<llo_original>
// kernel: tpu_custom_call.1
$region0: #{tpu_custom_call.1}
  #allocation0 [shape = 'u32[]', space=smem, size = 0x4, offset = 0x4, fixed_abs, tag = 'smem constant byte address 0x4 - core index']
  #allocation1 [shape = 'u32[144,128]{1,0:T(1,128)}', space=vmem, size = 0x12000, scoped, tag = 'internal scratch']
  %s0 = inlined_call_operand.hbm [shape: f32[16,128], index: 0, kind: input, shape index: {}]
  %s1 = inlined_call_operand.hbm [shape: f32[16,128], index: 1, kind: input, shape index: {}]
  %s2 = inlined_call_operand.hbm [shape: f32[1,8,128], index: 2, kind: output, shape index: {}]
  %s3 = sld [smem:[#allocation0]]
  $region30: #{tpu_custom_call.1} parent=0
    _
  %s5 = ssub.s32 1, %s3
  %s6 = scalar_select 0, %s5, %s3
  $region1: #{tpu_custom_call.1} parent=0
    #allocation2 [shape = 'u8[8192]{0}', space=vmem, size = 0x2000, scoped, tag = 'input window, operand 0, single buffered']
    #allocation3 [shape = 's32[1]{0}', space=sflag, size = 0x4, scoped, tag = 'scoped memory for tpu_custom_call.1']
    #allocation4 [shape = 's32[1]{0}', space=sflag, size = 0x4, scoped, tag = 'scoped memory for tpu_custom_call.1']
    #allocation5 [shape = 'u8[8192]{0}', space=vmem, size = 0x2000, scoped, tag = 'input window, operand 1, single buffered']
    #allocation6 [shape = 's32[1]{0}', space=sflag, size = 0x4, scoped, tag = 'scoped memory for tpu_custom_call.1']
    #allocation7 [shape = 'u8[4096]{0}', space=vmem, size = 0x1000, scoped, tag = 'output window, operand 0, single buffered']
    %7 = vsyncpa [#allocation3], 0
    %8 = vsyncpa [#allocation6], 0
    %9 = vsyncpa [#allocation4], 0
    // Predicated region
    $region2: #{tpu_custom_call.1} parent=1 // pred_check
      _
    $region3: #{tpu_custom_call.1} parent=1 // pred_check_branch
      %11 = sbr.rel (0) target = $region5
    $region4: #{tpu_custom_call.1} parent=1 // pred_region
      %s12 = sadd.s32 0, 0
      %p13 = scmp.lt.s32.totalorder %s12, 0
      %s14 = scalar_select %p13, %s12, 0
      %s15 = smul.u32 2, %s14
      %s17 = ssub.s32 256, 256
      %18 = vsyncadd [#allocation3], %s17
      %s19 = smul.addr %s15, 128
      %s20 = scalar_lea.hbm %s0, %s19
      %s21 = sshll.u32 [#allocation2], 4
      %s22 = int_to_ptr.vmem [resolvable:$true] %s21
      %27 = dma.hbm_to_vmem [thread:$0]  %s20, 256, %s22, [#allocation3], 128, 128, 8
    $region5: #{tpu_custom_call.1} parent=1 // pred_fallthru
      _
    // Predicated region
    $region6: #{tpu_custom_call.1} parent=1 // pred_check
      _
    $region7: #{tpu_custom_call.1} parent=1 // pred_check_branch
      %29 = sbr.rel (0) target = $region9
    $region8: #{tpu_custom_call.1} parent=1 // pred_region
      %s30 = sadd.s32 0, 0
      %p31 = scmp.lt.s32.totalorder %s30, 0
      %s32 = scalar_select %p31, %s30, 0
      %s33 = smul.u32 2, %s32
      %s35 = ssub.s32 256, 256
      %36 = vsyncadd [#allocation6], %s35
      %s37 = smul.addr %s33, 128
      %s38 = scalar_lea.hbm %s1, %s37
      %s39 = sshll.u32 [#allocation5], 4
      %s40 = int_to_ptr.vmem [resolvable:$true] %s39
      %45 = dma.hbm_to_vmem [thread:$0]  %s38, 256, %s40, [#allocation6], 128, 128, 8
    $region9: #{tpu_custom_call.1} parent=1 // pred_fallthru
      _
    // Predicated region
    $region10: #{tpu_custom_call.1} parent=1 // pred_check
      _
    $region11: #{tpu_custom_call.1} parent=1 // pred_check_branch
      %47 = sbr.rel (0) target = $region13
    $region12: #{tpu_custom_call.1} parent=1 // pred_region
      %48 = dma.done [#allocation3], 256
    $region13: #{tpu_custom_call.1} parent=1 // pred_fallthru
      _
    // Predicated region
    $region14: #{tpu_custom_call.1} parent=1 // pred_check
      _
    $region15: #{tpu_custom_call.1} parent=1 // pred_check_branch
      %50 = sbr.rel (0) target = $region17
    $region16: #{tpu_custom_call.1} parent=1 // pred_region
      %51 = dma.done [#allocation6], 256
    $region17: #{tpu_custom_call.1} parent=1 // pred_fallthru
      _
    %s52 = sadd.s32 0, 0
    %p53 = scmp.lt.s32.totalorder %s52, 0
    %s54 = scalar_select %p53, %s52, 0
    %s55 = smul.u32 2, %s54
    %s56 = sadd.s32 0, 0
    %p57 = scmp.lt.s32.totalorder %s56, 0
    %s58 = scalar_select %p57, %s56, 0
    %s59 = smul.u32 2, %s58
    %p60 = scmp.eq.s32.totalorder 0, 0
    // Predicated region
    $region18: #{tpu_custom_call.1} parent=1 // pred_check
      %p61 = pneg %p60
    $region19: #{tpu_custom_call.1} parent=1 // pred_check_branch
      %63 = sbr.rel (%p61) target = $region21
    $region20: #{tpu_custom_call.1} parent=1 // pred_region
      %64 = vst [vmem:[#allocation7] sm:$0xff] 0.0
    $region21: #{tpu_custom_call.1} parent=1 // pred_fallthru
      _
    %v65 = vld [vmem:[#allocation2] sm:$0xff]
    %v66 = vld [vmem:[#allocation2 + $0x8] sm:$0xff]
    %v67 = vld [vmem:[#allocation5] sm:$0xff]
    %v68 = vld [vmem:[#allocation5 + $0x8] sm:$0xff]
    %v69 = vsub.f32 %v65, %v67
    %v70 = vsub.f32 %v66, %v68
    %v71 = vand.u32 2147483647, %v69
    %v72 = vand.u32 2147483647, %v70
    %vm73 = vcmp.le.f32.partialorder %v71, 1.0
    %vm74 = vcmp.le.f32.partialorder %v72, 1.0
    %v75 = vmul.f32 %v71, 0.5
    %v76 = vmul.f32 %v72, 0.5
    %v77 = vmul.f32 %v75, %v71
    %v78 = vmul.f32 %v76, %v72
    %v79 = vsub.f32 %v71, 0.5
    %v80 = vsub.f32 %v72, 0.5
    %v81 = vsel %vm73, %v77, %v79
    %v82 = vsel %vm74, %v78, %v80
    %v83 = vld [vmem:[#allocation7] sm:$0xff]
    %v84 = vadd.f32 %v81, %v82
    %v85 = vadd.f32 %v83, %v84
    %86 = vst [vmem:[#allocation7] sm:$0xff] %v85
    // Predicated region
    $region22: #{tpu_custom_call.1} parent=1 // pred_check
      _
    $region23: #{tpu_custom_call.1} parent=1 // pred_check_branch
      %88 = sbr.rel (0) target = $region25
    $region24: #{tpu_custom_call.1} parent=1 // pred_region
      %s90 = ssub.s32 128, 128
      %91 = vsyncadd [#allocation4], %s90
      %s93 = sshll.u32 [#allocation7], 4
      %s94 = int_to_ptr.vmem [resolvable:$true] %s93
      %96 = dma.vmem_to_hbm [thread:$0]  %s94, 128, %s2, [#allocation4]
    $region25: #{tpu_custom_call.1} parent=1 // pred_fallthru
      _
    // Predicated region
    $region26: #{tpu_custom_call.1} parent=1 // pred_check
      _
    $region27: #{tpu_custom_call.1} parent=1 // pred_check_branch
      %98 = sbr.rel (0) target = $region29
    $region28: #{tpu_custom_call.1} parent=1 // pred_region
      %99 = dma.done [#allocation4], 128
    $region29: #{tpu_custom_call.1} parent=1 // pred_fallthru
      _
    %100 = vsyncpa [#allocation3], 1
    %101 = vsyncpa [#allocation6], 1
    %102 = vsyncpa [#allocation4], 1

</llo_original>
